<compile_context>
chip_gen: v5e
topology: v5e:2x2
jax: 0.10.0
libtpu: 0.0.40
codegen_flags: <defaults>
</compile_context>

<pallas_src>
import functools

import jax
import jax.numpy as jnp
import numpy as np
from jax.experimental import pallas as pl
from jax.experimental.pallas import tpu as pltpu


def _visual_attention_kernel(h_ref, patt_ref, feats_ref, *rest, has_mask):
    if has_mask:
        mask_ref, wh_ref, bh_ref, wa_ref, res_ref, weight_ref = rest
    else:
        mask_ref = None
        wh_ref, bh_ref, wa_ref, res_ref, weight_ref = rest

    # ---- att_h = h2att(h): (TB, R) x (R, H) MXU matmul in native dtypes ----
    att_h = jnp.dot(h_ref[...], wh_ref[...],
                    preferred_element_type=jnp.float32)                  # (TB, H) f32
    att_h = att_h + bh_ref[...].astype(jnp.float32)

    # ---- dot = tanh(p_att + att_h), f32 math (mandatory on v5e) -------------
    patt = patt_ref[...].astype(jnp.float32)                             # (TB, S, H)
    dot = jnp.tanh(patt + att_h[:, None, :])                             # (TB, S, H)

    # ---- alpha_net: reduce over hidden (lane) axis -> (TB, S) ---------------
    # (alpha_net bias omitted: softmax is shift-invariant and scores are
    #  never emitted, so it is an exact no-op on both outputs.)
    wa = wa_ref[...].astype(jnp.float32)                                 # (1, H)
    scores = jnp.sum(dot * wa[None, :, :], axis=-1)                      # (TB, S)

    # ---- softmax over att_size; optional mask folded into the exponentials -
    m = jnp.max(scores, axis=-1, keepdims=True)                          # (TB, 1)
    e = jnp.exp(scores - m)                                              # (TB, S)
    if has_mask:
        # softmax(s)*mask / sum(softmax(s)*mask) == e*mask / sum(e*mask)
        e = e * mask_ref[...].astype(jnp.float32)
    denom = jnp.sum(e, axis=-1, keepdims=True)                           # (TB, 1)
    w = e * pl.reciprocal(denom, approx=True)                            # (TB, S) f32

    # ---- att_res = sum_s w[b,s] * att_feats[b,s,:]  (fused VPU weighted sum,
    #      weights kept in f32; no M=1 MXU matvecs) ---------------------------
    feats = feats_ref[...].astype(jnp.float32)                           # (TB, S, F)
    res = jnp.sum(w[:, :, None] * feats, axis=1)                         # (TB, F)

    res_ref[...] = res.astype(res_ref.dtype)
    weight_ref[...] = w.astype(weight_ref.dtype)                         # (TB, S)


def _vmem_capacity_bytes():
    """Physical VMEM capacity, with a conservative (v7x-sized) fallback."""
    try:
        info = pltpu.get_tpu_info()
        cap = getattr(info, "vmem_capacity_bytes", None)
        if cap:
            return int(cap)
    except Exception:
        pass
    return 64 << 20


def _choose_block_b(B, per_elem_bytes, vmem_budget_bytes):
    """Largest divisor of B (preferring sublane-aligned multiples of 8) whose
    per-step footprint fits the budget.  Prefers an even number of grid steps
    (v7x dual-TC sharding) when an equally-aligned candidate exists."""
    divisors = [d for d in range(1, B + 1) if B % d == 0]
    aligned = [d for d in divisors if d % 8 == 0 or d == B]
    pool = aligned if aligned else divisors

    def fits(d):
        return d * per_elem_bytes <= vmem_budget_bytes

    fitting = [d for d in pool if fits(d)]
    if not fitting:
        fitting = [d for d in divisors if fits(d)] or [1]
    tb = max(fitting)

    # Prefer an even grid-step count so v7x's two TensorCores split evenly,
    # but only if the alternative tile is still sublane-aligned (>= 8).
    if (B // tb) % 2 != 0:
        even = [d for d in fitting if (B // d) % 2 == 0 and d % 8 == 0]
        if even:
            tb = max(even)
    return tb


def visual_attention(h, att_feats, p_att_feats, params, att_masks=None,
                     block_b=None):
    """Pallas implementation of Visual_Attention.forward. Returns (att_res, weight)."""
    # params = (W_h2att (R,H) pre-transposed, b_h2att (H,), w_alpha (H,), b_alpha ())
    # b_alpha is intentionally unused: softmax is shift-invariant and the raw
    # scores are never part of the module's outputs.
    wh, bh, wa = params[0], params[1], params[2]
    B = att_feats.shape[0]
    feat_dim = att_feats.shape[-1]
    att_hid = wh.shape[1]
    rnn_size = h.shape[-1]
    att_size = att_feats.size // B // feat_dim

    att_feats_r = att_feats.reshape(B, att_size, feat_dim)
    p_att_r = p_att_feats.reshape(B, att_size, att_hid)
    has_mask = att_masks is not None
    if has_mask:
        mask_r = att_masks.reshape(B, att_size)
        if mask_r.dtype == jnp.bool_:
            mask_r = mask_r.astype(jnp.int8)   # keep DMA narrow; cast in-kernel

    # ---- generation-aware VMEM budgeting ------------------------------------
    vmem_cap = _vmem_capacity_bytes()                      # 128 MiB v5e/v6e, 64 MiB v7x
    vmem_limit = min(int(vmem_cap * 0.6), 96 << 20)        # ~77 MiB v6e, ~38 MiB v7x
    param_bytes = (wh.size * wh.dtype.itemsize + 2 * att_hid * 4)
    chooser_budget = max(int(vmem_limit * 0.65) - 2 * param_bytes, 1 << 20)

    # Per-batch-element footprint: double-buffered streamed IO plus headroom
    # for the f32 intermediates (tanh chain, feats upcast for the weighted sum).
    io_bytes = (att_size * att_hid * p_att_r.dtype.itemsize
                + att_size * feat_dim * att_feats_r.dtype.itemsize
                + rnn_size * h.dtype.itemsize
                + feat_dim * att_feats_r.dtype.itemsize          # att_res out
                + att_size * 4)                                  # weight out (f32)
    if has_mask:
        io_bytes += att_size * mask_r.dtype.itemsize
    temp_bytes = att_size * (att_hid + feat_dim) * 4 * 2         # f32 temp headroom
    per_elem_bytes = 2 * io_bytes + temp_bytes

    TB = block_b if block_b is not None else _choose_block_b(
        B, per_elem_bytes, chooser_budget)
    assert B % TB == 0
    grid = (B // TB,)

    inputs = [h, p_att_r, att_feats_r]
    in_specs = [
        pl.BlockSpec((TB, rnn_size), lambda b: (b, 0)),              # h
        pl.BlockSpec((TB, att_size, att_hid), lambda b: (b, 0, 0)),  # p_att
        pl.BlockSpec((TB, att_size, feat_dim), lambda b: (b, 0, 0)), # att_feats
    ]
    if has_mask:
        inputs.append(mask_r)
        in_specs.append(pl.BlockSpec((TB, att_size), lambda b: (b, 0)))

    # Parameters use a constant block index -> DMA'd once, stay VMEM-resident.
    inputs += [wh, bh.reshape(1, att_hid), wa.reshape(1, att_hid)]
    in_specs += [
        pl.BlockSpec((rnn_size, att_hid), lambda b: (0, 0)),         # W_h2att
        pl.BlockSpec((1, att_hid), lambda b: (0, 0)),                # b_h2att
        pl.BlockSpec((1, att_hid), lambda b: (0, 0)),                # w_alpha
    ]

    kernel = functools.partial(_visual_attention_kernel, has_mask=has_mask)

    res, weight = pl.pallas_call(
        kernel,
        out_shape=(
            jax.ShapeDtypeStruct((B, feat_dim), att_feats.dtype),
            jax.ShapeDtypeStruct((B, att_size), jnp.float32),
        ),
        grid_spec=pltpu.PrefetchScalarGridSpec(
            num_scalar_prefetch=0,
            grid=grid,
            in_specs=in_specs,
            out_specs=[
                pl.BlockSpec((TB, feat_dim), lambda b: (b, 0)),      # att_res
                pl.BlockSpec((TB, att_size), lambda b: (b, 0)),      # weight
            ],
        ),
        compiler_params=pltpu.CompilerParams(
            dimension_semantics=("parallel",),
            vmem_limit_bytes=vmem_limit,
        ),
    )(*inputs)

    return res, weight


def _reference(h, att_feats, p_att_feats, params, att_masks=None):
    """Pure-JAX reference mirroring the PyTorch forward (keeps the alpha bias)."""
    wh, bh, wa, ba = params
    B = att_feats.shape[0]
    feat_dim = att_feats.shape[-1]
    att_hid = wh.shape[1]
    att_size = att_feats.size // B // feat_dim
    att = p_att_feats.reshape(-1, att_size, att_hid)
    att_h = h @ wh + bh
    dot = jnp.tanh(att + att_h[:, None, :])
    dot = dot.reshape(-1, att_hid) @ wa + ba
    dot = dot.reshape(-1, att_size)
    weight = jax.nn.softmax(dot, axis=1)
    if att_masks is not None:
        weight = weight * att_masks.reshape(-1, att_size).astype(jnp.float32)
        weight = weight / weight.sum(1, keepdims=True)
    feats = att_feats.reshape(-1, att_size, feat_dim)
    att_res = jnp.einsum("bs,bsf->bf", weight, feats)
    return att_res, weight


if __name__ == "__main__":
    # Small shapes consistent with the module.
    B, rnn_size, att_hid, att_size, feat_dim = 2, 32, 32, 16, 32

    key = jax.random.PRNGKey(0)
    k1, k2, k3, k4, k5, k6, k7 = jax.random.split(key, 7)

    # Inputs
    h = jax.random.normal(k1, (B, rnn_size), dtype=jnp.float32)
    att_feats = jax.random.normal(k2, (B, att_size, feat_dim), dtype=jnp.float32)
    p_att_feats = jax.random.normal(k3, (B, att_size, att_hid), dtype=jnp.float32)
    att_masks = (jax.random.uniform(k4, (B, att_size)) > 0.2).astype(jnp.float32)

    # Deterministic parameter init (nn.Linear-style uniform bounds).
    lim_h = 1.0 / np.sqrt(rnn_size)
    lim_a = 1.0 / np.sqrt(att_hid)
    wh = jax.random.uniform(k5, (rnn_size, att_hid), minval=-lim_h, maxval=lim_h)
    bh = jax.random.uniform(k6, (att_hid,), minval=-lim_h, maxval=lim_h)
    wa = jax.random.uniform(k7, (att_hid,), minval=-lim_a, maxval=lim_a)
    ba = jnp.array(0.01, dtype=jnp.float32)
    params = (wh.astype(jnp.float32), bh.astype(jnp.float32),
              wa.astype(jnp.float32), ba)

    # Masked path.
    att_res, weight = visual_attention(h, att_feats, p_att_feats, params, att_masks)
    att_res = jax.block_until_ready(att_res)
    weight = jax.block_until_ready(weight)
    ref_res, ref_w = _reference(h, att_feats, p_att_feats, params, att_masks)
    np.testing.assert_allclose(np.asarray(att_res), np.asarray(ref_res),
                               rtol=1e-3, atol=1e-3)
    np.testing.assert_allclose(np.asarray(weight), np.asarray(ref_w),
                               rtol=1e-3, atol=1e-3)

    # Unmasked (statically specialized) path.
    att_res_nm, weight_nm = visual_attention(h, att_feats, p_att_feats, params, None)
    att_res_nm = jax.block_until_ready(att_res_nm)
    weight_nm = jax.block_until_ready(weight_nm)
    ref_res_nm, ref_w_nm = _reference(h, att_feats, p_att_feats, params, None)
    np.testing.assert_allclose(np.asarray(att_res_nm), np.asarray(ref_res_nm),
                               rtol=1e-3, atol=1e-3)
    np.testing.assert_allclose(np.asarray(weight_nm), np.asarray(ref_w_nm),
                               rtol=1e-3, atol=1e-3)

    print("KERNEL_OK")
</pallas_src>

<mosaic_0001>
module attributes {stable_mosaic.version = 11 : i64} {
  func.func @_visual_attention_kernel(%arg0: i32, %arg1: memref<2x32xf32, #tpu.memory_space<vmem>>, %arg2: memref<2x16x32xf32, #tpu.memory_space<vmem>>, %arg3: memref<2x16x32xf32, #tpu.memory_space<vmem>>, %arg4: memref<2x16xf32, #tpu.memory_space<vmem>>, %arg5: memref<32x32xf32, #tpu.memory_space<vmem>>, %arg6: memref<1x32xf32, #tpu.memory_space<vmem>>, %arg7: memref<1x32xf32, #tpu.memory_space<vmem>>, %arg8: memref<2x32xf32, #tpu.memory_space<vmem>>, %arg9: memref<2x16xf32, #tpu.memory_space<vmem>>) attributes {dimension_semantics = [#tpu.dimension_semantics<parallel>], iteration_bounds = array<i64: 1>, scalar_prefetch = 0 : i64, scratch_operands = 0 : i64, tpu.core_type = #tpu.core_type<tc>, window_params = [{transform_indices = @transform_0, window_bounds = array<i64: 2, 32>}, {transform_indices = @transform_1, window_bounds = array<i64: 2, 16, 32>}, {transform_indices = @transform_2, window_bounds = array<i64: 2, 16, 32>}, {transform_indices = @transform_3, window_bounds = array<i64: 2, 16>}, {pipeline_mode = #tpu.pipeline_mode<synchronous>, transform_indices = @transform_4, window_bounds = array<i64: 32, 32>}, {pipeline_mode = #tpu.pipeline_mode<synchronous>, transform_indices = @transform_5, window_bounds = array<i64: 1, 32>}, {pipeline_mode = #tpu.pipeline_mode<synchronous>, transform_indices = @transform_6, window_bounds = array<i64: 1, 32>}, {transform_indices = @transform_7, window_bounds = array<i64: 2, 32>}, {transform_indices = @transform_8, window_bounds = array<i64: 2, 16>}]} {
    %c0 = arith.constant 0 : index
    %c0_0 = arith.constant 0 : index
    %0 = vector.load %arg1[%c0, %c0_0] : memref<2x32xf32, #tpu.memory_space<vmem>>, vector<2x32xf32>
    %c0_1 = arith.constant 0 : index
    %c0_2 = arith.constant 0 : index
    %1 = vector.load %arg5[%c0_1, %c0_2] : memref<32x32xf32, #tpu.memory_space<vmem>>, vector<32x32xf32>
    %cst = arith.constant dense<0.000000e+00> : vector<2x32xf32>
    %2 = tpu.matmul %0, %1, %cst {dimension_numbers = #tpu.dot_dimension_numbers<[1], [0], [0], [1], [0, 0, 1, 1], [], []>} : vector<2x32xf32>, vector<32x32xf32>, vector<2x32xf32> -> vector<2x32xf32>
    %c0_3 = arith.constant 0 : index
    %c0_4 = arith.constant 0 : index
    %3 = vector.load %arg6[%c0_3, %c0_4] : memref<1x32xf32, #tpu.memory_space<vmem>>, vector<1x32xf32>
    %4 = vector.broadcast %3 : vector<1x32xf32> to vector<2x32xf32>
    %5 = arith.addf %2, %4 : vector<2x32xf32>
    %c0_5 = arith.constant 0 : index
    %c0_6 = arith.constant 0 : index
    %c0_7 = arith.constant 0 : index
    %6 = vector.load %arg2[%c0_5, %c0_6, %c0_7] : memref<2x16x32xf32, #tpu.memory_space<vmem>>, vector<2x16x32xf32>
    %7 = vector.shape_cast %5 : vector<2x32xf32> to vector<2x1x32xf32>
    %8 = vector.broadcast %7 : vector<2x1x32xf32> to vector<2x16x32xf32>
    %9 = arith.addf %6, %8 : vector<2x16x32xf32>
    %10 = math.tanh %9 : vector<2x16x32xf32>
    %c0_8 = arith.constant 0 : index
    %c0_9 = arith.constant 0 : index
    %11 = vector.load %arg7[%c0_8, %c0_9] : memref<1x32xf32, #tpu.memory_space<vmem>>, vector<1x32xf32>
    %12 = vector.shape_cast %11 : vector<1x32xf32> to vector<1x1x32xf32>
    %13 = vector.broadcast %12 : vector<1x1x32xf32> to vector<2x16x32xf32>
    %14 = arith.mulf %10, %13 : vector<2x16x32xf32>
    %cst_10 = arith.constant dense<0.000000e+00> : vector<2x16xf32>
    %15 = vector.multi_reduction <add>, %14, %cst_10 [2] : vector<2x16x32xf32> to vector<2x16xf32>
    %cst_11 = arith.constant dense<0xFF800000> : vector<2xf32>
    %16 = vector.multi_reduction <maximumf>, %15, %cst_11 [1] : vector<2x16xf32> to vector<2xf32>
    %17 = vector.shape_cast %16 : vector<2xf32> to vector<2x1xf32>
    %18 = vector.broadcast %17 : vector<2x1xf32> to vector<2x16xf32>
    %19 = arith.subf %15, %18 : vector<2x16xf32>
    %20 = math.exp %19 : vector<2x16xf32>
    %c0_12 = arith.constant 0 : index
    %c0_13 = arith.constant 0 : index
    %21 = vector.load %arg4[%c0_12, %c0_13] : memref<2x16xf32, #tpu.memory_space<vmem>>, vector<2x16xf32>
    %22 = arith.mulf %20, %21 : vector<2x16xf32>
    %cst_14 = arith.constant dense<0.000000e+00> : vector<2xf32>
    %23 = vector.multi_reduction <add>, %22, %cst_14 [1] : vector<2x16xf32> to vector<2xf32>
    %24 = vector.shape_cast %23 : vector<2xf32> to vector<2x1xf32>
    %25 = tpu.reciprocal %24 {approx = true} : vector<2x1xf32> -> vector<2x1xf32>
    %26 = vector.broadcast %25 : vector<2x1xf32> to vector<2x16xf32>
    %27 = arith.mulf %22, %26 : vector<2x16xf32>
    %c0_15 = arith.constant 0 : index
    %c0_16 = arith.constant 0 : index
    %c0_17 = arith.constant 0 : index
    %28 = vector.load %arg3[%c0_15, %c0_16, %c0_17] : memref<2x16x32xf32, #tpu.memory_space<vmem>>, vector<2x16x32xf32>
    %29 = vector.shape_cast %27 : vector<2x16xf32> to vector<2x16x1xf32>
    %30 = vector.broadcast %29 : vector<2x16x1xf32> to vector<2x16x32xf32>
    %31 = arith.mulf %30, %28 : vector<2x16x32xf32>
    %cst_18 = arith.constant dense<0.000000e+00> : vector<2x32xf32>
    %32 = vector.multi_reduction <add>, %31, %cst_18 [1] : vector<2x16x32xf32> to vector<2x32xf32>
    %c0_19 = arith.constant 0 : index
    %c0_20 = arith.constant 0 : index
    %33 = vector.load %arg8[%c0_19, %c0_20] : memref<2x32xf32, #tpu.memory_space<vmem>>, vector<2x32xf32>
    tpu.vector_store %arg8[%c0_19, %c0_20], %32 {strides = array<i32>} : memref<2x32xf32, #tpu.memory_space<vmem>>, vector<2x32xf32>,
    %c0_21 = arith.constant 0 : index
    %c0_22 = arith.constant 0 : index
    %34 = vector.load %arg9[%c0_21, %c0_22] : memref<2x16xf32, #tpu.memory_space<vmem>>, vector<2x16xf32>
    tpu.vector_store %arg9[%c0_21, %c0_22], %27 {strides = array<i32>} : memref<2x16xf32, #tpu.memory_space<vmem>>, vector<2x16xf32>,
    return
  }
  func.func @transform_0(%arg0: i32) -> (i32, i32) {
    %c0_i32 = arith.constant 0 : i32
    %c0_i32_0 = arith.constant 0 : i32
    return %arg0, %c0_i32 : i32, i32
  }
  func.func @transform_1(%arg0: i32) -> (i32, i32, i32) {
    %c0_i32 = arith.constant 0 : i32
    %c0_i32_0 = arith.constant 0 : i32
    %c0_i32_1 = arith.constant 0 : i32
    return %arg0, %c0_i32, %c0_i32_0 : i32, i32, i32
  }
  func.func @transform_2(%arg0: i32) -> (i32, i32, i32) {
    %c0_i32 = arith.constant 0 : i32
    %c0_i32_0 = arith.constant 0 : i32
    %c0_i32_1 = arith.constant 0 : i32
    return %arg0, %c0_i32, %c0_i32_0 : i32, i32, i32
  }
  func.func @transform_3(%arg0: i32) -> (i32, i32) {
    %c0_i32 = arith.constant 0 : i32
    %c0_i32_0 = arith.constant 0 : i32
    return %arg0, %c0_i32 : i32, i32
  }
  func.func @transform_4(%arg0: i32) -> (i32, i32) {
    %c0_i32 = arith.constant 0 : i32
    %c0_i32_0 = arith.constant 0 : i32
    %c0_i32_1 = arith.constant 0 : i32
    return %c0_i32, %c0_i32_0 : i32, i32
  }
  func.func @transform_5(%arg0: i32) -> (i32, i32) {
    %c0_i32 = arith.constant 0 : i32
    %c0_i32_0 = arith.constant 0 : i32
    %c0_i32_1 = arith.constant 0 : i32
    return %c0_i32, %c0_i32_0 : i32, i32
  }
  func.func @transform_6(%arg0: i32) -> (i32, i32) {
    %c0_i32 = arith.constant 0 : i32
    %c0_i32_0 = arith.constant 0 : i32
    %c0_i32_1 = arith.constant 0 : i32
    return %c0_i32, %c0_i32_0 : i32, i32
  }
  func.func @transform_7(%arg0: i32) -> (i32, i32) {
    %c0_i32 = arith.constant 0 : i32
    %c0_i32_0 = arith.constant 0 : i32
    return %arg0, %c0_i32 : i32, i32
  }
  func.func @transform_8(%arg0: i32) -> (i32, i32) {
    %c0_i32 = arith.constant 0 : i32
    %c0_i32_0 = arith.constant 0 : i32
    return %arg0, %c0_i32 : i32, i32
  }
}

</mosaic_0001>

<llo_original>
// kernel: tpu_custom_call.1
$region0: #{tpu_custom_call.1}
  #allocation0 [shape = 'u32[]', space=smem, size = 0x4, offset = 0x4, fixed_abs, tag = 'smem constant byte address 0x4 - core index']
  #allocation1 [shape = 'u32[72,128]{1,0:T(1,128)}', space=vmem, size = 0x9000, scoped, tag = 'internal scratch']
  %s0 = inlined_call_operand.hbm [shape: f32[2,32], index: 0, kind: input, shape index: {}]
  %s1 = inlined_call_operand.hbm [shape: f32[2,16,32], index: 1, kind: input, shape index: {}]
  %s2 = inlined_call_operand.hbm [shape: f32[2,16,32], index: 2, kind: input, shape index: {}]
  %s3 = inlined_call_operand.vmem [shape: f32[2,16], index: 3, kind: input, shape index: {}]
  %s4 = inlined_call_operand.hbm [shape: f32[32,32], index: 4, kind: input, shape index: {}]
  %s5 = inlined_call_operand.vmem [shape: f32[1,32], index: 5, kind: input, shape index: {}]
  %s6 = inlined_call_operand.vmem [shape: f32[1,32], index: 6, kind: input, shape index: {}]
  %s7 = inlined_call_operand.hbm [shape: f32[2,32], index: 7, kind: output, shape index: {0}]
  %s8 = inlined_call_operand.hbm [shape: f32[2,16], index: 8, kind: output, shape index: {1}]
  %9 = xla_tuple %s7, %s8
  %s10 = sld [smem:[#allocation0]]
  $region62: #{tpu_custom_call.1} parent=0
    _
  %s12 = ssub.s32 1, %s10
  %s13 = scalar_select 0, %s12, %s10
  $region1: #{tpu_custom_call.1} parent=0
    #allocation2 [shape = 'u8[1024]{0}', space=vmem, size = 0x400, scoped, tag = 'input window, operand 0, single buffered']
    #allocation3 [shape = 's32[1]{0}', space=sflag, size = 0x4, scoped, tag = 'scoped memory for tpu_custom_call.1']
    #allocation4 [shape = 's32[1]{0}', space=sflag, size = 0x4, scoped, tag = 'scoped memory for tpu_custom_call.1']
    #allocation5 [shape = 'u8[16384]{0}', space=vmem, size = 0x4000, scoped, tag = 'input window, operand 1, single buffered']
    #allocation6 [shape = 's32[1]{0}', space=sflag, size = 0x4, scoped, tag = 'scoped memory for tpu_custom_call.1']
    #allocation7 [shape = 'u8[16384]{0}', space=vmem, size = 0x4000, scoped, tag = 'input window, operand 2, single buffered']
    #allocation8 [shape = 'u8[16384]{0}', space=vmem, size = 0x4000, scoped, tag = 'input window, operand 4, single buffered']
    #allocation9 [shape = 's32[1]{0}', space=sflag, size = 0x4, scoped, tag = 'scoped memory for tpu_custom_call.1']
    #allocation10 [shape = 'u8[1024]{0}', space=vmem, size = 0x400, scoped, tag = 'output window, operand 0, single buffered']
    #allocation11 [shape = 'u8[1024]{0}', space=vmem, size = 0x400, scoped, tag = 'output window, operand 1, single buffered']
    #allocation12 [shape = 's32[1]{0}', space=sflag, size = 0x4, scoped, tag = 'scoped memory for tpu_custom_call.1']
    %14 = vsyncpa [#allocation3], 0
    %15 = vsyncpa [#allocation6], 0
    %16 = vsyncpa [#allocation9], 0
    %17 = vsyncpa [#allocation4], 0
    %18 = vsyncpa [#allocation12], 0
    // Predicated region
    $region2: #{tpu_custom_call.1} parent=1 // pred_check
      _
    $region3: #{tpu_custom_call.1} parent=1 // pred_check_branch
      %20 = sbr.rel (0) target = $region5
    $region4: #{tpu_custom_call.1} parent=1 // pred_region
      %22 = vsyncadd [#allocation3], 0
      %s24 = sshll.u32 %s0, 4
      %s25 = int_to_ptr.hbm [resolvable:$true] %s24
      %s26 = sshll.u32 [#allocation2], 4
      %s27 = int_to_ptr.vmem [resolvable:$true] %s26
      %29 = dma.hbm_to_vmem [thread:$0]  %s25, 32, %s27, [#allocation3]
    $region5: #{tpu_custom_call.1} parent=1 // pred_fallthru
      _
    // Predicated region
    $region6: #{tpu_custom_call.1} parent=1 // pred_check
      _
    $region7: #{tpu_custom_call.1} parent=1 // pred_check_branch
      %31 = sbr.rel (0) target = $region9
    $region8: #{tpu_custom_call.1} parent=1 // pred_region
      %33 = vsyncadd [#allocation6], 0
      %s34 = sshll.u32 %s1, 4
      %s35 = int_to_ptr.hbm [resolvable:$true] %s34
      %s36 = sshll.u32 [#allocation5], 4
      %s37 = int_to_ptr.vmem [resolvable:$true] %s36
      %42 = dma.hbm_to_vmem [thread:$0]  %s35, 512, %s37, [#allocation6], 128, 128, 8
    $region9: #{tpu_custom_call.1} parent=1 // pred_fallthru
      _
    // Predicated region
    $region10: #{tpu_custom_call.1} parent=1 // pred_check
      _
    $region11: #{tpu_custom_call.1} parent=1 // pred_check_branch
      %44 = sbr.rel (0) target = $region13
    $region12: #{tpu_custom_call.1} parent=1 // pred_region
      %46 = vsyncadd [#allocation6], 0
      %s47 = sshll.u32 %s2, 4
      %s48 = int_to_ptr.hbm [resolvable:$true] %s47
      %s49 = sshll.u32 [#allocation7], 4
      %s50 = int_to_ptr.vmem [resolvable:$true] %s49
      %55 = dma.hbm_to_vmem [thread:$0]  %s48, 512, %s50, [#allocation6], 128, 128, 8
    $region13: #{tpu_custom_call.1} parent=1 // pred_fallthru
      _
    // Predicated region
    $region14: #{tpu_custom_call.1} parent=1 // pred_check
      _
    $region15: #{tpu_custom_call.1} parent=1 // pred_check_branch
      %57 = sbr.rel (0) target = $region17
    $region16: #{tpu_custom_call.1} parent=1 // pred_region
      _
    $region17: #{tpu_custom_call.1} parent=1 // pred_fallthru
      _
    // Predicated region
    $region18: #{tpu_custom_call.1} parent=1 // pred_check
      _
    $region19: #{tpu_custom_call.1} parent=1 // pred_check_branch
      %59 = sbr.rel (0) target = $region21
    $region20: #{tpu_custom_call.1} parent=1 // pred_region
      %61 = vsyncadd [#allocation9], 0
      %s62 = sshll.u32 %s4, 4
      %s63 = int_to_ptr.hbm [resolvable:$true] %s62
      %s64 = sshll.u32 [#allocation8], 4
      %s65 = int_to_ptr.vmem [resolvable:$true] %s64
      %70 = dma.hbm_to_vmem [thread:$0]  %s63, 512, %s65, [#allocation9], 128, 128, 8
    $region21: #{tpu_custom_call.1} parent=1 // pred_fallthru
      _
    // Predicated region
    $region22: #{tpu_custom_call.1} parent=1 // pred_check
      _
    $region23: #{tpu_custom_call.1} parent=1 // pred_check_branch
      %72 = sbr.rel (0) target = $region25
    $region24: #{tpu_custom_call.1} parent=1 // pred_region
      _
    $region25: #{tpu_custom_call.1} parent=1 // pred_fallthru
      _
    // Predicated region
    $region26: #{tpu_custom_call.1} parent=1 // pred_check
      _
    $region27: #{tpu_custom_call.1} parent=1 // pred_check_branch
      %74 = sbr.rel (0) target = $region29
    $region28: #{tpu_custom_call.1} parent=1 // pred_region
      _
    $region29: #{tpu_custom_call.1} parent=1 // pred_fallthru
      _
    // Predicated region
    $region30: #{tpu_custom_call.1} parent=1 // pred_check
      _
    $region31: #{tpu_custom_call.1} parent=1 // pred_check_branch
      %76 = sbr.rel (0) target = $region33
    $region32: #{tpu_custom_call.1} parent=1 // pred_region
      %78 = dma.done [#allocation3], 32
    $region33: #{tpu_custom_call.1} parent=1 // pred_fallthru
      _
    // Predicated region
    $region34: #{tpu_custom_call.1} parent=1 // pred_check
      _
    $region35: #{tpu_custom_call.1} parent=1 // pred_check_branch
      %80 = sbr.rel (0) target = $region37
    $region36: #{tpu_custom_call.1} parent=1 // pred_region
      %82 = dma.done [#allocation6], 512
    $region37: #{tpu_custom_call.1} parent=1 // pred_fallthru
      _
    // Predicated region
    $region38: #{tpu_custom_call.1} parent=1 // pred_check
      _
    $region39: #{tpu_custom_call.1} parent=1 // pred_check_branch
      %84 = sbr.rel (0) target = $region41
    $region40: #{tpu_custom_call.1} parent=1 // pred_region
      %86 = dma.done [#allocation6], 512
    $region41: #{tpu_custom_call.1} parent=1 // pred_fallthru
      _
    // Predicated region
    $region42: #{tpu_custom_call.1} parent=1 // pred_check
      _
    $region43: #{tpu_custom_call.1} parent=1 // pred_check_branch
      %88 = sbr.rel (0) target = $region45
    $region44: #{tpu_custom_call.1} parent=1 // pred_region
      %90 = dma.done [#allocation9], 512
    $region45: #{tpu_custom_call.1} parent=1 // pred_fallthru
      _
    %v91 = vld [vmem:[#allocation2] sm:$0x3]
    %v92 = vld [vmem:[#allocation8] sm:$0xff]
    %v93 = vld [vmem:[#allocation8 + $0x8] sm:$0xff]
    %v94 = vld [vmem:[#allocation8 + $0x10] sm:$0xff]
    %v95 = vld [vmem:[#allocation8 + $0x18] sm:$0xff]
    %v96 = vld [vmem:[%s5] sm:$0x1]
    %v98 = vperm.slane %v96, 0
    %vm100 = vcmask 261120
    %v102 = vsel %vm100, %v91, 0
    %104 = vmatpush.msra.mxu0 0.0
    %105 = vmatpush.msra.mxu0 0.0
    %106 = vmatpush.msra.mxu0 0.0
    %107 = vmatpush.msra.mxu0 0.0
    %108 = vmatpush.msra.mxu0 0.0
    %109 = vmatpush.msra.mxu0 0.0
    %110 = vmatpush.msra.mxu0 0.0
    %111 = vmatpush.msra.mxu0 0.0
    %112 = vmatpush.msra.mxu0 0.0
    %113 = vmatpush.msra.mxu0 0.0
    %114 = vmatpush.msra.mxu0 0.0
    %115 = vmatpush.msra.mxu0 0.0
    %116 = vmatpush.msra.mxu0 %v95
    %117 = vmatpush.msra.mxu0 %v94
    %118 = vmatpush.msra.mxu0 %v93
    %119 = vmatpush.msra.mxu0 %v92
    %120 = vmatmul.f32.gmra.mxu0 %v102
    %v121 = vpop.f32.mrf.mxu0
    %v122 = vadd.f32 %v98, %v121
    %123 = vdwg.mxu0
    %v124 = vld [vmem:[#allocation5] sm:$0xff]
    %v125 = vld [vmem:[#allocation5 + $0x8] sm:$0xff]
    %v126 = vld [vmem:[#allocation5 + $0x10] sm:$0xff]
    %v127 = vld [vmem:[#allocation5 + $0x18] sm:$0xff]
    %v129 = vrot.slane %v122, 1
    %v130 = vperm.slane %v122, 0
    %v131 = vperm.slane %v129, 0
    %v134 = vadd.f32 %v124, %v130
    %v135 = vadd.f32 %v125, %v130
    %v136 = vadd.f32 %v126, %v131
    %v137 = vadd.f32 %v127, %v131
    %v138 = vtanh.pop %v134
    %v139 = vtanh.pop %v135
    %v140 = vtanh.pop %v136
    %v141 = vtanh.pop %v137
    %v142 = vld [vmem:[%s6] sm:$0x1]
    %v144 = vperm.slane %v142, 0
    %v146 = vmul.f32 %v138, %v144
    %v147 = vmul.f32 %v139, %v144
    %v148 = vmul.f32 %v140, %v144
    %v149 = vmul.f32 %v141, %v144
    %v150 = vsel %vm100, %v146, 0.0
    %151 = vadd.xlane.f32.xlu0 %v150
    %v152 = vpop.xlane.xlu0 %151
    %v153 = vsel %vm100, %v147, 0.0
    %154 = vadd.xlane.f32.xlu0 %v153
    %v155 = vpop.xlane.xlu0 %154
    %v156 = vsel %vm100, %v148, 0.0
    %157 = vadd.xlane.f32.xlu0 %v156
    %v158 = vpop.xlane.xlu0 %157
    %v159 = vsel %vm100, %v149, 0.0
    %160 = vadd.xlane.f32.xlu0 %v159
    %v161 = vpop.xlane.xlu0 %160
    %v166 = vlaneseq
    %v167 = vand.u32 %v166, 127
    %v168 = vperm.slane %v152, %v167
    %v169 = vadd.s32 %v167, 4294967288
    %v170 = vperm.slane %v155, %v169
    %vm171 = vcmask 130112
    %v172 = vsel %vm171, %v170, %v168
    %v173 = vperm.slane %v158, %v167
    %v174 = vperm.slane %v161, %v169
    %v175 = vsel %vm171, %v174, %v173
    %vm176 = vcmask 1041409
    %v177 = vsel %vm176, %v175, %v172
    %vm179 = vcmask 123904
    %v180 = vsel %vm179, %v177, -inf
    %181 = vmax.xlane.f32.xlu0 %v180
    %v182 = vpop.xlane.xlu0 %181
    %v184 = vperm.slane %v182, 0
    %v185 = vperm.slane %v182, 1
    %v188 = vsub.f32 %v152, %v184
    %v189 = vsub.f32 %v155, %v184
    %v190 = vsub.f32 %v158, %v185
    %v191 = vsub.f32 %v161, %v185
    %v192 = vmul.f32 %v188, 1.442695
    %v193 = vpow.pop %v192
    %v194 = vmul.f32 %v189, 1.442695
    %v195 = vpow.pop %v194
    %v196 = vmul.f32 %v190, 1.442695
    %v197 = vpow.pop %v196
    %v198 = vmul.f32 %v191, 1.442695
    %v199 = vpow.pop %v198
    %v200 = vld [vmem:[%s3] sm:$0x3]
    %v202 = vperm.slane %v200, 0
    %v203 = vlaneseq
    %v204 = vshrl.u32 %v203, 7
    %206 = vset.pattern.permute.xlu0 %v204
    %207 = vperm.xlu0 %206, %v202
    %v208 = vpop.permute.xlu0 %207
    %v209 = vlaneseq
    %v210 = vshrl.u32 %v209, 7
    %v211 = vadd.s32 %v210, 8
    %212 = vset.pattern.permute.xlu0 %v211
    %213 = vperm.xlu0 %212, %v202
    %v214 = vpop.permute.xlu0 %213
    %v215 = vperm.slane %v200, 1
    %v216 = vlaneseq
    %v217 = vshrl.u32 %v216, 7
    %219 = vset.pattern.permute.xlu0 %v217
    %220 = vperm.xlu0 %219, %v215
    %v221 = vpop.permute.xlu0 %220
    %v222 = vlaneseq
    %v223 = vshrl.u32 %v222, 7
    %v224 = vadd.s32 %v223, 8
    %225 = vset.pattern.permute.xlu0 %v224
    %226 = vperm.xlu0 %225, %v215
    %v227 = vpop.permute.xlu0 %226
    %v232 = vmul.f32 %v193, %v208
    %v233 = vmul.f32 %v195, %v214
    %v234 = vmul.f32 %v197, %v221
    %v235 = vmul.f32 %v199, %v227
    %240 = vset.pattern.permute.xlu0 0
    %241 = vperm.xlu0 %240, %v232
    %v242 = vpop.permute.xlu0 %241
    %243 = vset.pattern.permute.xlu0 0
    %244 = vperm.xlu0 %243, %v233
    %v245 = vpop.permute.xlu0 %244
    %246 = vset.pattern.permute.xlu0 0
    %247 = vperm.xlu0 %246, %v234
    %v248 = vpop.permute.xlu0 %247
    %249 = vset.pattern.permute.xlu0 0
    %250 = vperm.xlu0 %249, %v235
    %v251 = vpop.permute.xlu0 %250
    %v252 = vperm.slane %v242, %v167
    %v253 = vperm.slane %v245, %v169
    %v254 = vsel %vm171, %v253, %v252
    %v255 = vperm.slane %v248, %v167
    %v256 = vperm.slane %v251, %v169
    %v257 = vsel %vm171, %v256, %v255
    %v258 = vsel %vm176, %v257, %v254
    %v260 = vsel %vm179, %v258, 0.0
    %261 = vadd.xlane.f32.xlu0 %v260
    %v262 = vpop.xlane.xlu0 %261
    %v263 = vrcp.pop %v262
    %v265 = vperm.slane %v263, 0
    %v266 = vperm.slane %v263, 1
    %v269 = vmul.f32 %v232, %v265
    %v270 = vmul.f32 %v233, %v265
    %v271 = vmul.f32 %v234, %v266
    %v272 = vmul.f32 %v235, %v266
    %v273 = vld [vmem:[#allocation7] sm:$0xff]
    %v274 = vld [vmem:[#allocation7 + $0x8] sm:$0xff]
    %v275 = vld [vmem:[#allocation7 + $0x10] sm:$0xff]
    %v276 = vld [vmem:[#allocation7 + $0x18] sm:$0xff]
    %278 = vset.pattern.permute.xlu0 0
    %279 = vperm.xlu0 %278, %v269
    %v280 = vpop.permute.xlu0 %279
    %283 = vset.pattern.permute.xlu0 0
    %284 = vperm.xlu0 %283, %v270
    %v285 = vpop.permute.xlu0 %284
    %288 = vset.pattern.permute.xlu0 0
    %289 = vperm.xlu0 %288, %v271
    %v290 = vpop.permute.xlu0 %289
    %293 = vset.pattern.permute.xlu0 0
    %294 = vperm.xlu0 %293, %v272
    %v295 = vpop.permute.xlu0 %294
    %v297 = vmul.f32 %v280, %v273
    %v298 = vmul.f32 %v285, %v274
    %v299 = vmul.f32 %v290, %v275
    %v300 = vmul.f32 %v295, %v276
    %v301 = vsel %vm100, %v297, 0.0
    %v302 = vsel %vm100, %v298, 0.0
    %v303 = vadd.f32 %v301, %v302
    %v304 = vrot.slane %v303, 4
    %v305 = vadd.f32 %v303, %v304
    %v306 = vrot.slane %v305, 2
    %v307 = vadd.f32 %v305, %v306
    %v308 = vrot.slane %v307, 1
    %v309 = vadd.f32 %v307, %v308
    %v310 = vsel %vm100, %v299, 0.0
    %v311 = vsel %vm100, %v300, 0.0
    %v312 = vadd.f32 %v310, %v311
    %v313 = vrot.slane %v312, 4
    %v314 = vadd.f32 %v312, %v313
    %v315 = vrot.slane %v314, 2
    %v316 = vadd.f32 %v314, %v315
    %v317 = vrot.slane %v316, 1
    %v318 = vadd.f32 %v316, %v317
    %v321 = vsel %vm176, %v318, %v309
    %vm323 = vcmask 254976
    %324 = vst.msk [vmem:[#allocation10] sm:$0x3] %vm323, %v321
    %v325 = vperm.slane %v280, %v167
    %v326 = vperm.slane %v285, %v169
    %v327 = vsel %vm171, %v326, %v325
    %v328 = vperm.slane %v290, %v167
    %v329 = vperm.slane %v295, %v169
    %v330 = vsel %vm171, %v329, %v328
    %v331 = vsel %vm176, %v330, %v327
    %333 = vst.msk [vmem:[#allocation11] sm:$0x3] %vm179, %v331
    // Predicated region
    $region46: #{tpu_custom_call.1} parent=1 // pred_check
      _
    $region47: #{tpu_custom_call.1} parent=1 // pred_check_branch
      %335 = sbr.rel (0) target = $region49
    $region48: #{tpu_custom_call.1} parent=1 // pred_region
      %337 = vsyncadd [#allocation4], 0
      %s339 = sshll.u32 [#allocation10], 4
      %s340 = int_to_ptr.vmem [resolvable:$true] %s339
      %s341 = sshll.u32 %s7, 4
      %s342 = int_to_ptr.hbm [resolvable:$true] %s341
      %344 = dma.vmem_to_hbm [thread:$0]  %s340, 32, %s342, [#allocation4]
    $region49: #{tpu_custom_call.1} parent=1 // pred_fallthru
      _
    // Predicated region
    $region50: #{tpu_custom_call.1} parent=1 // pred_check
      _
    $region51: #{tpu_custom_call.1} parent=1 // pred_check_branch
      %346 = sbr.rel (0) target = $region53
    $region52: #{tpu_custom_call.1} parent=1 // pred_region
      %348 = vsyncadd [#allocation12], 0
      %s350 = sshll.u32 [#allocation11], 4
      %s351 = int_to_ptr.vmem [resolvable:$true] %s350
      %s352 = sshll.u32 %s8, 4
      %s353 = int_to_ptr.hbm [resolvable:$true] %s352
      %355 = dma.vmem_to_hbm [thread:$0]  %s351, 32, %s353, [#allocation12]
    $region53: #{tpu_custom_call.1} parent=1 // pred_fallthru
      _
    // Predicated region
    $region54: #{tpu_custom_call.1} parent=1 // pred_check
      _
    $region55: #{tpu_custom_call.1} parent=1 // pred_check_branch
      %357 = sbr.rel (0) target = $region57
    $region56: #{tpu_custom_call.1} parent=1 // pred_region
      %359 = dma.done [#allocation4], 32
    $region57: #{tpu_custom_call.1} parent=1 // pred_fallthru
      _
    // Predicated region
    $region58: #{tpu_custom_call.1} parent=1 // pred_check
      _
    $region59: #{tpu_custom_call.1} parent=1 // pred_check_branch
      %361 = sbr.rel (0) target = $region61
    $region60: #{tpu_custom_call.1} parent=1 // pred_region
      %363 = dma.done [#allocation12], 32
    $region61: #{tpu_custom_call.1} parent=1 // pred_fallthru
      _
    %364 = vsyncpa [#allocation3], 1
    %365 = vsyncpa [#allocation6], 1
    %366 = vsyncpa [#allocation9], 1
    %367 = vsyncpa [#allocation4], 1
    %368 = vsyncpa [#allocation12], 1

</llo_original>
